<compile_context>
chip_gen: v6e
topology: v6e:2x2x1
jax: 0.10.0
libtpu: 0.0.40
codegen_flags: <defaults>
</compile_context>

<pallas_src>
import jax
import jax.numpy as jnp
from jax.experimental import pallas as pl
from jax.experimental.pallas import tpu as pltpu


def _round_up(n, m):
    return ((n + m - 1) // m) * m


# ---------------------------------------------------------------------------
# Kernel: one (TM, FKp) row-tile of flattened chunks -> (TM, Dp) embeddings.
# Weights/biases are VMEM-resident across the whole grid (index_map -> (0, 0)).
# ---------------------------------------------------------------------------
def chunk_embedder_kernel(x_ref, wc_ref, bc_ref, w1_ref, b1_ref, w2_ref, b2_ref,
                          o_ref, h1_ref):
    x = x_ref[...]                                                  # (TM, FKp) bf16

    # "Conv1d" with L == kernel  ==  dense projection to d_model (f32 accumulate).
    h = jnp.dot(x, wc_ref[...], preferred_element_type=jnp.float32) + bc_ref[...]

    # PositionwiseFeedForward: w2(relu(w1(h)))   (dropout = identity at eval).
    h1 = jnp.dot(h.astype(jnp.bfloat16), w1_ref[...],
                 preferred_element_type=jnp.float32) + b1_ref[...]
    h1_ref[...] = jnp.maximum(h1, 0.0)                              # f32 VMEM scratch

    out = jnp.dot(h1_ref[...].astype(jnp.bfloat16), w2_ref[...],
                  preferred_element_type=jnp.float32) + b2_ref[...]
    o_ref[...] = out.astype(o_ref.dtype)


# ---------------------------------------------------------------------------
# One-time parameter preparation (hoisted out of the per-call path):
# reshape + transpose to (in, out), zero-pad to 128-lane multiples, cast to bf16.
# ---------------------------------------------------------------------------
def prepare_params(conv_w, conv_b, w1, b1, w2, b2, *, lane=128):
    d_model, F, K = conv_w.shape
    d_ff = w1.shape[0]
    FK = F * K
    FKp = _round_up(FK, lane)
    Dp = _round_up(d_model, lane)
    DFFp = _round_up(d_ff, lane)

    def pad2(a, rows, cols):
        a = jnp.asarray(a, jnp.float32)
        return jnp.zeros((rows, cols), jnp.float32).at[:a.shape[0], :a.shape[1]].set(a)

    wc = pad2(conv_w.reshape(d_model, FK).T, FKp, Dp).astype(jnp.bfloat16)   # (FKp, Dp)
    w1p = pad2(w1.T, Dp, DFFp).astype(jnp.bfloat16)                          # (Dp, DFFp)
    w2p = pad2(w2.T, DFFp, Dp).astype(jnp.bfloat16)                          # (DFFp, Dp)
    bc = pad2(conv_b.reshape(1, d_model), 1, Dp)                             # f32 biases
    b1p = pad2(b1.reshape(1, d_ff), 1, DFFp)
    b2p = pad2(b2.reshape(1, d_model), 1, Dp)

    return dict(wc=wc, bc=bc, w1=w1p, b1=b1p, w2=w2p, b2=b2p,
                d_model=d_model, d_ff=d_ff, FK=FK, FKp=FKp, Dp=Dp, DFFp=DFFp)


# ---------------------------------------------------------------------------
# Tile-size / VMEM-limit selection.  Budget is conservative (fits the default
# scoped VMEM on v5e and v7x's 64 MiB physical VMEM).
# ---------------------------------------------------------------------------
def _pick_tile_m(M, FKp, Dp, DFFp, weight_bytes):
    per_row = (2 * FKp * 2        # x tile, bf16, double-buffered
               + 2 * Dp * 4       # out tile, f32, double-buffered
               + DFFp * 4         # h1 VMEM scratch, f32
               + Dp * 4 + DFFp * 2 + FKp * 2)   # headroom for live intermediates
    budget = max(24 * (1 << 20) - 2 * weight_bytes, 128 * per_row)
    tm = max(128, min(1024, (budget // per_row) // 128 * 128))
    tm = min(tm, _round_up(M, 128))
    vmem_limit = min(64 * (1 << 20), 2 * weight_bytes + tm * per_row + (16 << 20))
    return int(tm), int(vmem_limit)


def chunk_embedder_forward(x, params):
    """x: (B, N, features, chunk_kernel) f32 -> (B, N, d_model) f32."""
    B, N, F, K = x.shape
    FK, FKp, Dp, DFFp = params["FK"], params["FKp"], params["Dp"], params["DFFp"]
    d_model = params["d_model"]
    assert FK == F * K
    M = B * N

    weight_bytes = sum(int(params[k].size) * params[k].dtype.itemsize
                       for k in ("wc", "w1", "w2", "bc", "b1", "b2"))
    tm, vmem_limit = _pick_tile_m(M, FKp, Dp, DFFp, weight_bytes)
    m_pad = _round_up(M, tm)
    grid_m = m_pad // tm

    # Lane-dense, zero-padded bf16 input slab (padding rows/cols contribute exact zeros).
    x_flat = x.reshape(M, FK).astype(jnp.bfloat16)
    x_pad = jnp.zeros((m_pad, FKp), jnp.bfloat16).at[:M, :FK].set(x_flat)

    flops = 2 * m_pad * (FKp * Dp + Dp * DFFp + DFFp * Dp)
    bytes_accessed = x_pad.size * 2 + weight_bytes + m_pad * Dp * 4

    out_pad = pl.pallas_call(
        chunk_embedder_kernel,
        out_shape=jax.ShapeDtypeStruct((m_pad, Dp), jnp.float32),
        grid_spec=pltpu.PrefetchScalarGridSpec(
            num_scalar_prefetch=0,
            grid=(grid_m,),
            in_specs=[
                pl.BlockSpec((tm, FKp), lambda i: (i, 0)),    # x: streamed row tiles
                pl.BlockSpec((FKp, Dp), lambda i: (0, 0)),    # conv weight (resident)
                pl.BlockSpec((1, Dp), lambda i: (0, 0)),      # conv bias
                pl.BlockSpec((Dp, DFFp), lambda i: (0, 0)),   # w1
                pl.BlockSpec((1, DFFp), lambda i: (0, 0)),    # b1
                pl.BlockSpec((DFFp, Dp), lambda i: (0, 0)),   # w2
                pl.BlockSpec((1, Dp), lambda i: (0, 0)),      # b2
            ],
            out_specs=pl.BlockSpec((tm, Dp), lambda i: (i, 0)),
            scratch_shapes=[pltpu.VMEM((tm, DFFp), jnp.float32)],   # h1 staging
        ),
        compiler_params=pltpu.CompilerParams(
            dimension_semantics=("parallel",),       # shards across v7x's 2 TCs
            vmem_limit_bytes=vmem_limit,
        ),
        cost_estimate=pl.CostEstimate(
            flops=int(flops), transcendentals=0, bytes_accessed=int(bytes_accessed)),
    )(x_pad, params["wc"], params["bc"], params["w1"], params["b1"],
      params["w2"], params["b2"])

    return out_pad[:M, :d_model].reshape(B, N, d_model)


# ---------------------------------------------------------------------------
# Pure-JAX references.
# ---------------------------------------------------------------------------
def reference_forward_f32(x, conv_w, conv_b, w1, b1, w2, b2):
    B, N, F, K = x.shape
    h = jnp.einsum("bnfk,dfk->bnd", x, conv_w) + conv_b
    h1 = jnp.maximum(h @ w1.T + b1, 0.0)
    return h1 @ w2.T + b2


def reference_forward_bf16(x, conv_w, conv_b, w1, b1, w2, b2):
    """Mirror of the kernel's precision policy (bf16 matmul operands, f32 accumulation)."""
    B, N, F, K = x.shape
    d_model = conv_w.shape[0]
    xf = x.reshape(B * N, F * K).astype(jnp.bfloat16)
    wc = conv_w.reshape(d_model, F * K).T.astype(jnp.bfloat16)
    h = jnp.dot(xf, wc, preferred_element_type=jnp.float32) + conv_b
    h1 = jnp.maximum(jnp.dot(h.astype(jnp.bfloat16), w1.T.astype(jnp.bfloat16),
                             preferred_element_type=jnp.float32) + b1, 0.0)
    out = jnp.dot(h1.astype(jnp.bfloat16), w2.T.astype(jnp.bfloat16),
                  preferred_element_type=jnp.float32) + b2
    return out.reshape(B, N, d_model)


if __name__ == "__main__":
    # Small shapes consistent with the module.
    B, N = 2, 8
    features, chunk_kernel = 4, 3
    d_model, d_ff = 32, 64

    key = jax.random.PRNGKey(0)
    k_x, k_cw, k_cb, k_w1, k_b1, k_w2, k_b2 = jax.random.split(key, 7)

    x = jax.random.normal(k_x, (B, N, features, chunk_kernel), jnp.float32)
    conv_w = jax.random.normal(k_cw, (d_model, features, chunk_kernel), jnp.float32) * 0.1
    conv_b = jax.random.normal(k_cb, (d_model,), jnp.float32) * 0.1
    w1 = jax.random.normal(k_w1, (d_ff, d_model), jnp.float32) * 0.1
    b1 = jax.random.normal(k_b1, (d_ff,), jnp.float32) * 0.1
    w2 = jax.random.normal(k_w2, (d_model, d_ff), jnp.float32) * 0.1
    b2 = jax.random.normal(k_b2, (d_model,), jnp.float32) * 0.1

    # One-time weight preparation (transpose/pad/cast hoisted out of the forward path).
    params = prepare_params(conv_w, conv_b, w1, b1, w2, b2)
    fwd = jax.jit(lambda xx: chunk_embedder_forward(xx, params))

    out = jax.block_until_ready(fwd(x))
    assert out.shape == (B, N, d_model)

    ref_bf16 = reference_forward_bf16(x, conv_w, conv_b, w1, b1, w2, b2)
    ref_f32 = reference_forward_f32(x, conv_w, conv_b, w1, b1, w2, b2)
    assert jnp.allclose(out, ref_bf16, atol=2e-3, rtol=2e-3), "mismatch vs bf16-matched reference"
    assert jnp.allclose(out, ref_f32, atol=5e-2, rtol=5e-2), "mismatch vs f32 reference"

    print("KERNEL_OK")
</pallas_src>

<mosaic_0001>
module attributes {stable_mosaic.version = 11 : i64} {
  func.func @chunk_embedder_kernel(%arg0: i32, %arg1: memref<128x128xbf16, #tpu.memory_space<vmem>>, %arg2: memref<128x128xbf16, #tpu.memory_space<vmem>>, %arg3: memref<1x128xf32, #tpu.memory_space<vmem>>, %arg4: memref<128x128xbf16, #tpu.memory_space<vmem>>, %arg5: memref<1x128xf32, #tpu.memory_space<vmem>>, %arg6: memref<128x128xbf16, #tpu.memory_space<vmem>>, %arg7: memref<1x128xf32, #tpu.memory_space<vmem>>, %arg8: memref<128x128xf32, #tpu.memory_space<vmem>>, %arg9: memref<128x128xf32, #tpu.memory_space<vmem>>) attributes {dimension_semantics = [#tpu.dimension_semantics<parallel>], iteration_bounds = array<i64: 1>, scalar_prefetch = 0 : i64, scratch_operands = 1 : i64, tpu.core_type = #tpu.core_type<tc>, window_params = [{transform_indices = @transform_0, window_bounds = array<i64: 128, 128>}, {pipeline_mode = #tpu.pipeline_mode<synchronous>, transform_indices = @transform_1, window_bounds = array<i64: 128, 128>}, {pipeline_mode = #tpu.pipeline_mode<synchronous>, transform_indices = @transform_2, window_bounds = array<i64: 1, 128>}, {pipeline_mode = #tpu.pipeline_mode<synchronous>, transform_indices = @transform_3, window_bounds = array<i64: 128, 128>}, {pipeline_mode = #tpu.pipeline_mode<synchronous>, transform_indices = @transform_4, window_bounds = array<i64: 1, 128>}, {pipeline_mode = #tpu.pipeline_mode<synchronous>, transform_indices = @transform_5, window_bounds = array<i64: 128, 128>}, {pipeline_mode = #tpu.pipeline_mode<synchronous>, transform_indices = @transform_6, window_bounds = array<i64: 1, 128>}, {transform_indices = @transform_7, window_bounds = array<i64: 128, 128>}]} {
    %c0 = arith.constant 0 : index
    %c0_0 = arith.constant 0 : index
    %0 = vector.load %arg1[%c0, %c0_0] : memref<128x128xbf16, #tpu.memory_space<vmem>>, vector<128x128xbf16>
    %c0_1 = arith.constant 0 : index
    %c0_2 = arith.constant 0 : index
    %1 = vector.load %arg2[%c0_1, %c0_2] : memref<128x128xbf16, #tpu.memory_space<vmem>>, vector<128x128xbf16>
    %cst = arith.constant dense<0.000000e+00> : vector<128x128xf32>
    %2 = tpu.matmul %0, %1, %cst {dimension_numbers = #tpu.dot_dimension_numbers<[1], [0], [0], [1], [0, 0, 1, 1], [], []>} : vector<128x128xbf16>, vector<128x128xbf16>, vector<128x128xf32> -> vector<128x128xf32>
    %c0_3 = arith.constant 0 : index
    %c0_4 = arith.constant 0 : index
    %3 = vector.load %arg3[%c0_3, %c0_4] : memref<1x128xf32, #tpu.memory_space<vmem>>, vector<1x128xf32>
    %4 = vector.broadcast %3 : vector<1x128xf32> to vector<128x128xf32>
    %5 = arith.addf %2, %4 : vector<128x128xf32>
    %6 = arith.truncf %5 : vector<128x128xf32> to vector<128x128xbf16>
    %c0_5 = arith.constant 0 : index
    %c0_6 = arith.constant 0 : index
    %7 = vector.load %arg4[%c0_5, %c0_6] : memref<128x128xbf16, #tpu.memory_space<vmem>>, vector<128x128xbf16>
    %cst_7 = arith.constant dense<0.000000e+00> : vector<128x128xf32>
    %8 = tpu.matmul %6, %7, %cst_7 {dimension_numbers = #tpu.dot_dimension_numbers<[1], [0], [0], [1], [0, 0, 1, 1], [], []>} : vector<128x128xbf16>, vector<128x128xbf16>, vector<128x128xf32> -> vector<128x128xf32>
    %c0_8 = arith.constant 0 : index
    %c0_9 = arith.constant 0 : index
    %9 = vector.load %arg5[%c0_8, %c0_9] : memref<1x128xf32, #tpu.memory_space<vmem>>, vector<1x128xf32>
    %10 = vector.broadcast %9 : vector<1x128xf32> to vector<128x128xf32>
    %11 = arith.addf %8, %10 : vector<128x128xf32>
    %cst_10 = arith.constant 0.000000e+00 : f32
    %12 = vector.broadcast %cst_10 : f32 to vector<128x128xf32>
    %13 = arith.maximumf %11, %12 : vector<128x128xf32>
    %c0_11 = arith.constant 0 : index
    %c0_12 = arith.constant 0 : index
    %14 = vector.load %arg9[%c0_11, %c0_12] : memref<128x128xf32, #tpu.memory_space<vmem>>, vector<128x128xf32>
    tpu.vector_store %arg9[%c0_11, %c0_12], %13 {strides = array<i32>} : memref<128x128xf32, #tpu.memory_space<vmem>>, vector<128x128xf32>,
    %c0_13 = arith.constant 0 : index
    %c0_14 = arith.constant 0 : index
    %15 = vector.load %arg9[%c0_13, %c0_14] : memref<128x128xf32, #tpu.memory_space<vmem>>, vector<128x128xf32>
    %16 = arith.truncf %15 : vector<128x128xf32> to vector<128x128xbf16>
    %c0_15 = arith.constant 0 : index
    %c0_16 = arith.constant 0 : index
    %17 = vector.load %arg6[%c0_15, %c0_16] : memref<128x128xbf16, #tpu.memory_space<vmem>>, vector<128x128xbf16>
    %cst_17 = arith.constant dense<0.000000e+00> : vector<128x128xf32>
    %18 = tpu.matmul %16, %17, %cst_17 {dimension_numbers = #tpu.dot_dimension_numbers<[1], [0], [0], [1], [0, 0, 1, 1], [], []>} : vector<128x128xbf16>, vector<128x128xbf16>, vector<128x128xf32> -> vector<128x128xf32>
    %c0_18 = arith.constant 0 : index
    %c0_19 = arith.constant 0 : index
    %19 = vector.load %arg7[%c0_18, %c0_19] : memref<1x128xf32, #tpu.memory_space<vmem>>, vector<1x128xf32>
    %20 = vector.broadcast %19 : vector<1x128xf32> to vector<128x128xf32>
    %21 = arith.addf %18, %20 : vector<128x128xf32>
    %c0_20 = arith.constant 0 : index
    %c0_21 = arith.constant 0 : index
    %22 = vector.load %arg8[%c0_20, %c0_21] : memref<128x128xf32, #tpu.memory_space<vmem>>, vector<128x128xf32>
    tpu.vector_store %arg8[%c0_20, %c0_21], %21 {strides = array<i32>} : memref<128x128xf32, #tpu.memory_space<vmem>>, vector<128x128xf32>,
    return
  }
  func.func @transform_0(%arg0: i32) -> (i32, i32) {
    %c0_i32 = arith.constant 0 : i32
    %c0_i32_0 = arith.constant 0 : i32
    return %arg0, %c0_i32 : i32, i32
  }
  func.func @transform_1(%arg0: i32) -> (i32, i32) {
    %c0_i32 = arith.constant 0 : i32
    %c0_i32_0 = arith.constant 0 : i32
    %c0_i32_1 = arith.constant 0 : i32
    return %c0_i32, %c0_i32_0 : i32, i32
  }
  func.func @transform_2(%arg0: i32) -> (i32, i32) {
    %c0_i32 = arith.constant 0 : i32
    %c0_i32_0 = arith.constant 0 : i32
    %c0_i32_1 = arith.constant 0 : i32
    return %c0_i32, %c0_i32_0 : i32, i32
  }
  func.func @transform_3(%arg0: i32) -> (i32, i32) {
    %c0_i32 = arith.constant 0 : i32
    %c0_i32_0 = arith.constant 0 : i32
    %c0_i32_1 = arith.constant 0 : i32
    return %c0_i32, %c0_i32_0 : i32, i32
  }
  func.func @transform_4(%arg0: i32) -> (i32, i32) {
    %c0_i32 = arith.constant 0 : i32
    %c0_i32_0 = arith.constant 0 : i32
    %c0_i32_1 = arith.constant 0 : i32
    return %c0_i32, %c0_i32_0 : i32, i32
  }
  func.func @transform_5(%arg0: i32) -> (i32, i32) {
    %c0_i32 = arith.constant 0 : i32
    %c0_i32_0 = arith.constant 0 : i32
    %c0_i32_1 = arith.constant 0 : i32
    return %c0_i32, %c0_i32_0 : i32, i32
  }
  func.func @transform_6(%arg0: i32) -> (i32, i32) {
    %c0_i32 = arith.constant 0 : i32
    %c0_i32_0 = arith.constant 0 : i32
    %c0_i32_1 = arith.constant 0 : i32
    return %c0_i32, %c0_i32_0 : i32, i32
  }
  func.func @transform_7(%arg0: i32) -> (i32, i32) {
    %c0_i32 = arith.constant 0 : i32
    %c0_i32_0 = arith.constant 0 : i32
    return %arg0, %c0_i32 : i32, i32
  }
}

</mosaic_0001>

<llo_original>
// kernel: _lambda_.1
$region0: #{_lambda_.1}
  #allocation0 [shape = 'u32[]', space=smem, size = 0x4, offset = 0x4, fixed_abs, tag = 'smem constant byte address 0x4 - core index']
  #allocation1 [shape = 'u32[144,128]{1,0:T(1,128)}', space=vmem, size = 0x12000, scoped, tag = 'internal scratch']
  #allocation2 [shape = 'f32[128,128]{1,0:T(8,128)}', space=vmem, size = 0x10000, scoped, tag = 'scratch operand']
  %s0 = inlined_call_operand.vmem [shape: bf16[128,128], index: 0, kind: input, shape index: {}]
  %s1 = inlined_call_operand.hbm [shape: bf16[128,128], index: 1, kind: input, shape index: {}]
  %s2 = inlined_call_operand.vmem [shape: f32[1,128], index: 2, kind: input, shape index: {}]
  %s3 = inlined_call_operand.vmem [shape: bf16[128,128], index: 3, kind: input, shape index: {}]
  %s4 = inlined_call_operand.vmem [shape: f32[1,128], index: 4, kind: input, shape index: {}]
  %s5 = inlined_call_operand.vmem [shape: bf16[128,128], index: 5, kind: input, shape index: {}]
  %s6 = inlined_call_operand.vmem [shape: f32[1,128], index: 6, kind: input, shape index: {}]
  %s7 = inlined_call_operand.vmem [shape: f32[128,128], index: 7, kind: output, shape index: {}]
  %s8 = sld [smem:[#allocation0]]
  $region42: #{_lambda_.1} parent=0
    _
  %s10 = ssub.s32 1, %s8
  %s11 = scalar_select 0, %s10, %s8
  $region1: #{_lambda_.1} parent=0
    #allocation3 [shape = 'u8[32768]{0}', space=vmem, size = 0x8000, scoped, tag = 'input window, operand 1, single buffered']
    #allocation4 [shape = 's32[1]{0}', space=sflag, size = 0x4, scoped, tag = 'scoped memory for _lambda_.1']
    %12 = vsyncpa [#allocation4], 0
    // Predicated region
    $region2: #{_lambda_.1} parent=1 // pred_check
      _
    $region3: #{_lambda_.1} parent=1 // pred_check_branch
      %14 = sbr.rel (0) target = $region5
    $region4: #{_lambda_.1} parent=1 // pred_region
      _
    $region5: #{_lambda_.1} parent=1 // pred_fallthru
      _
    // Predicated region
    $region6: #{_lambda_.1} parent=1 // pred_check
      _
    $region7: #{_lambda_.1} parent=1 // pred_check_branch
      %16 = sbr.rel (0) target = $region9
    $region8: #{_lambda_.1} parent=1 // pred_region
      %s18 = ssub.s32 1024, 1024
      %19 = vsyncadd [#allocation4], %s18
      %s20 = sshll.u32 [#allocation3], 4
      %s21 = int_to_ptr.vmem [resolvable:$true] %s20
      %26 = dma.hbm_to_vmem [thread:$0]  %s1, 1024, %s21, [#allocation4], 64, 64, 4
    $region9: #{_lambda_.1} parent=1 // pred_fallthru
      _
    // Predicated region
    $region10: #{_lambda_.1} parent=1 // pred_check
      _
    $region11: #{_lambda_.1} parent=1 // pred_check_branch
      %28 = sbr.rel (0) target = $region13
    $region12: #{_lambda_.1} parent=1 // pred_region
      _
    $region13: #{_lambda_.1} parent=1 // pred_fallthru
      _
    // Predicated region
    $region14: #{_lambda_.1} parent=1 // pred_check
      _
    $region15: #{_lambda_.1} parent=1 // pred_check_branch
      %30 = sbr.rel (0) target = $region17
    $region16: #{_lambda_.1} parent=1 // pred_region
      _
    $region17: #{_lambda_.1} parent=1 // pred_fallthru
      _
    // Predicated region
    $region18: #{_lambda_.1} parent=1 // pred_check
      _
    $region19: #{_lambda_.1} parent=1 // pred_check_branch
      %32 = sbr.rel (0) target = $region21
    $region20: #{_lambda_.1} parent=1 // pred_region
      _
    $region21: #{_lambda_.1} parent=1 // pred_fallthru
      _
    // Predicated region
    $region22: #{_lambda_.1} parent=1 // pred_check
      _
    $region23: #{_lambda_.1} parent=1 // pred_check_branch
      %34 = sbr.rel (0) target = $region25
    $region24: #{_lambda_.1} parent=1 // pred_region
      _
    $region25: #{_lambda_.1} parent=1 // pred_fallthru
      _
    // Predicated region
    $region26: #{_lambda_.1} parent=1 // pred_check
      _
    $region27: #{_lambda_.1} parent=1 // pred_check_branch
      %36 = sbr.rel (0) target = $region29
    $region28: #{_lambda_.1} parent=1 // pred_region
      _
    $region29: #{_lambda_.1} parent=1 // pred_fallthru
      _
    // Predicated region
    $region30: #{_lambda_.1} parent=1 // pred_check
      _
    $region31: #{_lambda_.1} parent=1 // pred_check_branch
      %38 = sbr.rel (0) target = $region33
    $region32: #{_lambda_.1} parent=1 // pred_region
      %39 = dma.done [#allocation4], 1024
    $region33: #{_lambda_.1} parent=1 // pred_fallthru
      _
    %v41 = vld [vmem:[%s0] sm:$0xf]
    %v42 = vld [vmem:[%s0 + $0x4] sm:$0xf]
    %v43 = vld [vmem:[%s0 + $0x8] sm:$0xf]
    %v44 = vld [vmem:[%s0 + $0xc] sm:$0xf]
    %v45 = vld [vmem:[%s0 + $0x10] sm:$0xf]
    %v46 = vld [vmem:[%s0 + $0x14] sm:$0xf]
    %v47 = vld [vmem:[%s0 + $0x18] sm:$0xf]
    %v48 = vld [vmem:[%s0 + $0x1c] sm:$0xf]
    %v49 = vld [vmem:[%s0 + $0x20] sm:$0xf]
    %v50 = vld [vmem:[%s0 + $0x24] sm:$0xf]
    %v51 = vld [vmem:[%s0 + $0x28] sm:$0xf]
    %v52 = vld [vmem:[%s0 + $0x2c] sm:$0xf]
    %v53 = vld [vmem:[%s0 + $0x30] sm:$0xf]
    %v54 = vld [vmem:[%s0 + $0x34] sm:$0xf]
    %v55 = vld [vmem:[%s0 + $0x38] sm:$0xf]
    %v56 = vld [vmem:[%s0 + $0x3c] sm:$0xf]
    %v57 = vld [vmem:[#allocation3] sm:$0xf]
    %v58 = vld [vmem:[#allocation3 + $0x4] sm:$0xf]
    %v59 = vld [vmem:[#allocation3 + $0x8] sm:$0xf]
    %v60 = vld [vmem:[#allocation3 + $0xc] sm:$0xf]
    %v61 = vld [vmem:[#allocation3 + $0x10] sm:$0xf]
    %v62 = vld [vmem:[#allocation3 + $0x14] sm:$0xf]
    %v63 = vld [vmem:[#allocation3 + $0x18] sm:$0xf]
    %v64 = vld [vmem:[#allocation3 + $0x1c] sm:$0xf]
    %v65 = vld [vmem:[#allocation3 + $0x20] sm:$0xf]
    %v66 = vld [vmem:[#allocation3 + $0x24] sm:$0xf]
    %v67 = vld [vmem:[#allocation3 + $0x28] sm:$0xf]
    %v68 = vld [vmem:[#allocation3 + $0x2c] sm:$0xf]
    %v69 = vld [vmem:[#allocation3 + $0x30] sm:$0xf]
    %v70 = vld [vmem:[#allocation3 + $0x34] sm:$0xf]
    %v71 = vld [vmem:[#allocation3 + $0x38] sm:$0xf]
    %v72 = vld [vmem:[#allocation3 + $0x3c] sm:$0xf]
    %v73 = vld [vmem:[%s2] sm:$0x1]
    %v75 = vlaneseq
    %v76 = vshrl.u32 %v75, 7
    %v77 = vsub.s32 0, %v76
    %v78 = vrot.slane %v73, %v77
    %v96 = vunpack.c.l.b16 %v41
    %v97 = vunpack.c.l.b16 %v42
    %v98 = vunpack.c.l.b16 %v43
    %v99 = vunpack.c.l.b16 %v44
    %v100 = vunpack.c.l.b16 %v45
    %v101 = vunpack.c.l.b16 %v46
    %v102 = vunpack.c.l.b16 %v47
    %v103 = vunpack.c.l.b16 %v48
    %v104 = vunpack.c.l.b16 %v49
    %v105 = vunpack.c.l.b16 %v50
    %v106 = vunpack.c.l.b16 %v51
    %v107 = vunpack.c.l.b16 %v52
    %v108 = vunpack.c.l.b16 %v53
    %v109 = vunpack.c.l.b16 %v54
    %v110 = vunpack.c.l.b16 %v55
    %v111 = vunpack.c.l.b16 %v56
    %v112 = vpack.c.b16 %v97, %v96
    %v113 = vpack.c.b16 %v99, %v98
    %v114 = vpack.c.b16 %v101, %v100
    %v115 = vpack.c.b16 %v103, %v102
    %v116 = vpack.c.b16 %v105, %v104
    %v117 = vpack.c.b16 %v107, %v106
    %v118 = vpack.c.b16 %v109, %v108
    %v119 = vpack.c.b16 %v111, %v110
    %v144 = vunpack.c.l.b16 %v57
    %v145 = vunpack.c.l.b16 %v58
    %v146 = vunpack.c.l.b16 %v59
    %v147 = vunpack.c.l.b16 %v60
    %v148 = vunpack.c.l.b16 %v61
    %v149 = vunpack.c.l.b16 %v62
    %v150 = vunpack.c.l.b16 %v63
    %v151 = vunpack.c.l.b16 %v64
    %v152 = vunpack.c.l.b16 %v65
    %v153 = vunpack.c.l.b16 %v66
    %v154 = vunpack.c.l.b16 %v67
    %v155 = vunpack.c.l.b16 %v68
    %v156 = vunpack.c.l.b16 %v69
    %v157 = vunpack.c.l.b16 %v70
    %v158 = vunpack.c.l.b16 %v71
    %v159 = vunpack.c.l.b16 %v72
    %v160 = vpack.c.b16 %v145, %v144
    %v161 = vpack.c.b16 %v147, %v146
    %v162 = vpack.c.b16 %v149, %v148
    %v163 = vpack.c.b16 %v151, %v150
    %v164 = vpack.c.b16 %v153, %v152
    %v165 = vpack.c.b16 %v155, %v154
    %v166 = vpack.c.b16 %v157, %v156
    %v167 = vpack.c.b16 %v159, %v158
    %176 = vmatprep.subr.bf16.mxu0 0
    %177 = vmatpush1.bf16.msra.mxu0 %v167
    %178 = vmatprep.subr.bf16.mxu0 0
    %179 = vmatpush1.bf16.msra.mxu0 %v166
    %180 = vmatprep.subr.bf16.mxu0 0
    %181 = vmatpush1.bf16.msra.mxu0 %v165
    %182 = vmatprep.subr.bf16.mxu0 0
    %183 = vmatpush1.bf16.msra.mxu0 %v164
    %184 = vmatprep.subr.bf16.mxu0 0
    %185 = vmatpush1.bf16.msra.mxu0 %v163
    %186 = vmatprep.subr.bf16.mxu0 0
    %187 = vmatpush1.bf16.msra.mxu0 %v162
    %188 = vmatprep.subr.bf16.mxu0 0
    %189 = vmatpush1.bf16.msra.mxu0 %v161
    %190 = vmatprep.subr.bf16.mxu0 0
    %191 = vmatpush1.bf16.msra.mxu0 %v160
    %192 = vmatprep.subr.bf16.mxu0 0
    %193 = vmatpush2.bf16.msra.mxu0 0
    %194 = vmatprep.subr.bf16.mxu0 0
    %195 = vmatpush2.bf16.msra.mxu0 0
    %196 = vmatprep.subr.bf16.mxu0 0
    %197 = vmatpush2.bf16.msra.mxu0 0
    %198 = vmatprep.subr.bf16.mxu0 0
    %199 = vmatpush2.bf16.msra.mxu0 0
    %200 = vmatprep.subr.bf16.mxu0 0
    %201 = vmatpush2.bf16.msra.mxu0 0
    %202 = vmatprep.subr.bf16.mxu0 0
    %203 = vmatpush2.bf16.msra.mxu0 0
    %204 = vmatprep.subr.bf16.mxu0 0
    %205 = vmatpush2.bf16.msra.mxu0 0
    %206 = vmatprep.subr.bf16.mxu0 0
    %207 = vmatpush2.bf16.msra.mxu0 0
    %208 = vmatprep.mubr.bf16.mxu0 0
    %209 = vmatmul.mubr.bf16.gmra.mxu0 %v112
    %v210 = vpop.f32.mrf.mxu0
    %v211 = vadd.f32 %v78, %v210
    %v212 = vpop.f32.mrf.mxu0
    %v213 = vpop.f32.mrf.mxu0
    %v214 = vadd.f32 %v78, %v213
    %v215 = vpop.f32.mrf.mxu0
    %216 = vmatprep.mubr.bf16.mxu0 0
    %217 = vmatmul.mubr.bf16.gmra.mxu0 %v113
    %v218 = vpop.f32.mrf.mxu0
    %v219 = vadd.f32 %v78, %v218
    %v220 = vpop.f32.mrf.mxu0
    %v221 = vpop.f32.mrf.mxu0
    %v222 = vadd.f32 %v78, %v221
    %v223 = vpop.f32.mrf.mxu0
    %224 = vmatprep.mubr.bf16.mxu0 0
    %225 = vmatmul.mubr.bf16.gmra.mxu0 %v114
    %v226 = vpop.f32.mrf.mxu0
    %v227 = vadd.f32 %v78, %v226
    %v228 = vpop.f32.mrf.mxu0
    %v229 = vpop.f32.mrf.mxu0
    %v230 = vadd.f32 %v78, %v229
    %v231 = vpop.f32.mrf.mxu0
    %232 = vmatprep.mubr.bf16.mxu0 0
    %233 = vmatmul.mubr.bf16.gmra.mxu0 %v115
    %v234 = vpop.f32.mrf.mxu0
    %v235 = vadd.f32 %v78, %v234
    %v236 = vpop.f32.mrf.mxu0
    %v237 = vpop.f32.mrf.mxu0
    %v238 = vadd.f32 %v78, %v237
    %v239 = vpop.f32.mrf.mxu0
    %240 = vmatprep.mubr.bf16.mxu0 0
    %241 = vmatmul.mubr.bf16.gmra.mxu0 %v116
    %v242 = vpop.f32.mrf.mxu0
    %v243 = vadd.f32 %v78, %v242
    %v244 = vpop.f32.mrf.mxu0
    %v245 = vpop.f32.mrf.mxu0
    %v246 = vadd.f32 %v78, %v245
    %v247 = vpop.f32.mrf.mxu0
    %248 = vmatprep.mubr.bf16.mxu0 0
    %249 = vmatmul.mubr.bf16.gmra.mxu0 %v117
    %v250 = vpop.f32.mrf.mxu0
    %v251 = vadd.f32 %v78, %v250
    %v252 = vpop.f32.mrf.mxu0
    %v253 = vpop.f32.mrf.mxu0
    %v254 = vadd.f32 %v78, %v253
    %v255 = vpop.f32.mrf.mxu0
    %256 = vmatprep.mubr.bf16.mxu0 0
    %257 = vmatmul.mubr.bf16.gmra.mxu0 %v118
    %v258 = vpop.f32.mrf.mxu0
    %v259 = vadd.f32 %v78, %v258
    %v260 = vpop.f32.mrf.mxu0
    %v261 = vpop.f32.mrf.mxu0
    %v262 = vadd.f32 %v78, %v261
    %v263 = vpop.f32.mrf.mxu0
    %264 = vmatprep.mubr.bf16.mxu0 0
    %265 = vmatmul.mubr.bf16.gmra.mxu0 %v119
    %v266 = vpop.f32.mrf.mxu0
    %v267 = vadd.f32 %v78, %v266
    %v268 = vpop.f32.mrf.mxu0
    %v269 = vpop.f32.mrf.mxu0
    %v270 = vadd.f32 %v78, %v269
    %v271 = vpop.f32.mrf.mxu0
    %272 = vdwg.mxu0
    %v273 = vpack.c.bf16 %v214, %v211
    %v274 = vpack.c.bf16 %v222, %v219
    %v275 = vpack.c.bf16 %v230, %v227
    %v276 = vpack.c.bf16 %v238, %v235
    %v277 = vpack.c.bf16 %v246, %v243
    %v278 = vpack.c.bf16 %v254, %v251
    %v279 = vpack.c.bf16 %v262, %v259
    %v280 = vpack.c.bf16 %v270, %v267
    %v281 = vld [vmem:[%s3] sm:$0xf]
    %v282 = vld [vmem:[%s3 + $0x4] sm:$0xf]
    %v283 = vld [vmem:[%s3 + $0x8] sm:$0xf]
    %v284 = vld [vmem:[%s3 + $0xc] sm:$0xf]
    %v285 = vld [vmem:[%s3 + $0x10] sm:$0xf]
    %v286 = vld [vmem:[%s3 + $0x14] sm:$0xf]
    %v287 = vld [vmem:[%s3 + $0x18] sm:$0xf]
    %v288 = vld [vmem:[%s3 + $0x1c] sm:$0xf]
    %v289 = vld [vmem:[%s3 + $0x20] sm:$0xf]
    %v290 = vld [vmem:[%s3 + $0x24] sm:$0xf]
    %v291 = vld [vmem:[%s3 + $0x28] sm:$0xf]
    %v292 = vld [vmem:[%s3 + $0x2c] sm:$0xf]
    %v293 = vld [vmem:[%s3 + $0x30] sm:$0xf]
    %v294 = vld [vmem:[%s3 + $0x34] sm:$0xf]
    %v295 = vld [vmem:[%s3 + $0x38] sm:$0xf]
    %v296 = vld [vmem:[%s3 + $0x3c] sm:$0xf]
    %v297 = vld [vmem:[%s4] sm:$0x1]
    %v299 = vlaneseq
    %v300 = vshrl.u32 %v299, 7
    %v301 = vsub.s32 0, %v300
    %v302 = vrot.slane %v297, %v301
    %v320 = vunpack.c.l.b16 %v281
    %v321 = vunpack.c.l.b16 %v282
    %v322 = vunpack.c.l.b16 %v283
    %v323 = vunpack.c.l.b16 %v284
    %v324 = vunpack.c.l.b16 %v285
    %v325 = vunpack.c.l.b16 %v286
    %v326 = vunpack.c.l.b16 %v287
    %v327 = vunpack.c.l.b16 %v288
    %v328 = vunpack.c.l.b16 %v289
    %v329 = vunpack.c.l.b16 %v290
    %v330 = vunpack.c.l.b16 %v291
    %v331 = vunpack.c.l.b16 %v292
    %v332 = vunpack.c.l.b16 %v293
    %v333 = vunpack.c.l.b16 %v294
    %v334 = vunpack.c.l.b16 %v295
    %v335 = vunpack.c.l.b16 %v296
    %v336 = vpack.c.b16 %v321, %v320
    %v337 = vpack.c.b16 %v323, %v322
    %v338 = vpack.c.b16 %v325, %v324
    %v339 = vpack.c.b16 %v327, %v326
    %v340 = vpack.c.b16 %v329, %v328
    %v341 = vpack.c.b16 %v331, %v330
    %v342 = vpack.c.b16 %v333, %v332
    %v343 = vpack.c.b16 %v335, %v334
    %352 = vmatprep.subr.bf16.mxu0 0
    %353 = vmatpush1.bf16.msra.mxu0 %v343
    %354 = vmatprep.subr.bf16.mxu0 0
    %355 = vmatpush1.bf16.msra.mxu0 %v342
    %356 = vmatprep.subr.bf16.mxu0 0
    %357 = vmatpush1.bf16.msra.mxu0 %v341
    %358 = vmatprep.subr.bf16.mxu0 0
    %359 = vmatpush1.bf16.msra.mxu0 %v340
    %360 = vmatprep.subr.bf16.mxu0 0
    %361 = vmatpush1.bf16.msra.mxu0 %v339
    %362 = vmatprep.subr.bf16.mxu0 0
    %363 = vmatpush1.bf16.msra.mxu0 %v338
    %364 = vmatprep.subr.bf16.mxu0 0
    %365 = vmatpush1.bf16.msra.mxu0 %v337
    %366 = vmatprep.subr.bf16.mxu0 0
    %367 = vmatpush1.bf16.msra.mxu0 %v336
    %368 = vmatprep.subr.bf16.mxu0 0
    %369 = vmatpush2.bf16.msra.mxu0 0
    %370 = vmatprep.subr.bf16.mxu0 0
    %371 = vmatpush2.bf16.msra.mxu0 0
    %372 = vmatprep.subr.bf16.mxu0 0
    %373 = vmatpush2.bf16.msra.mxu0 0
    %374 = vmatprep.subr.bf16.mxu0 0
    %375 = vmatpush2.bf16.msra.mxu0 0
    %376 = vmatprep.subr.bf16.mxu0 0
    %377 = vmatpush2.bf16.msra.mxu0 0
    %378 = vmatprep.subr.bf16.mxu0 0
    %379 = vmatpush2.bf16.msra.mxu0 0
    %380 = vmatprep.subr.bf16.mxu0 0
    %381 = vmatpush2.bf16.msra.mxu0 0
    %382 = vmatprep.subr.bf16.mxu0 0
    %383 = vmatpush2.bf16.msra.mxu0 0
    %384 = vmatprep.mubr.bf16.mxu0 0
    %385 = vmatmul.mubr.bf16.gmra.mxu0 %v273
    %v386 = vpop.f32.mrf.mxu0
    %v387 = vadd.f32 %v302, %v386
    %v388 = vpop.f32.mrf.mxu0
    %v389 = vpop.f32.mrf.mxu0
    %v390 = vadd.f32 %v302, %v389
    %v391 = vpop.f32.mrf.mxu0
    %392 = vmatprep.mubr.bf16.mxu0 0
    %393 = vmatmul.mubr.bf16.gmra.mxu0 %v274
    %v394 = vpop.f32.mrf.mxu0
    %v395 = vadd.f32 %v302, %v394
    %v396 = vpop.f32.mrf.mxu0
    %v397 = vpop.f32.mrf.mxu0
    %v398 = vadd.f32 %v302, %v397
    %v399 = vpop.f32.mrf.mxu0
    %400 = vmatprep.mubr.bf16.mxu0 0
    %401 = vmatmul.mubr.bf16.gmra.mxu0 %v275
    %v402 = vpop.f32.mrf.mxu0
    %v403 = vadd.f32 %v302, %v402
    %v404 = vpop.f32.mrf.mxu0
    %v405 = vpop.f32.mrf.mxu0
    %v406 = vadd.f32 %v302, %v405
    %v407 = vpop.f32.mrf.mxu0
    %408 = vmatprep.mubr.bf16.mxu0 0
    %409 = vmatmul.mubr.bf16.gmra.mxu0 %v276
    %v410 = vpop.f32.mrf.mxu0
    %v411 = vadd.f32 %v302, %v410
    %v412 = vpop.f32.mrf.mxu0
    %v413 = vpop.f32.mrf.mxu0
    %v414 = vadd.f32 %v302, %v413
    %v415 = vpop.f32.mrf.mxu0
    %416 = vmatprep.mubr.bf16.mxu0 0
    %417 = vmatmul.mubr.bf16.gmra.mxu0 %v277
    %v418 = vpop.f32.mrf.mxu0
    %v419 = vadd.f32 %v302, %v418
    %v420 = vpop.f32.mrf.mxu0
    %v421 = vpop.f32.mrf.mxu0
    %v422 = vadd.f32 %v302, %v421
    %v423 = vpop.f32.mrf.mxu0
    %424 = vmatprep.mubr.bf16.mxu0 0
    %425 = vmatmul.mubr.bf16.gmra.mxu0 %v278
    %v426 = vpop.f32.mrf.mxu0
    %v427 = vadd.f32 %v302, %v426
    %v428 = vpop.f32.mrf.mxu0
    %v429 = vpop.f32.mrf.mxu0
    %v430 = vadd.f32 %v302, %v429
    %v431 = vpop.f32.mrf.mxu0
    %432 = vmatprep.mubr.bf16.mxu0 0
    %433 = vmatmul.mubr.bf16.gmra.mxu0 %v279
    %v434 = vpop.f32.mrf.mxu0
    %v435 = vadd.f32 %v302, %v434
    %v436 = vpop.f32.mrf.mxu0
    %v437 = vpop.f32.mrf.mxu0
    %v438 = vadd.f32 %v302, %v437
    %v439 = vpop.f32.mrf.mxu0
    %440 = vmatprep.mubr.bf16.mxu0 0
    %441 = vmatmul.mubr.bf16.gmra.mxu0 %v280
    %v442 = vpop.f32.mrf.mxu0
    %v443 = vadd.f32 %v302, %v442
    %v444 = vpop.f32.mrf.mxu0
    %v445 = vpop.f32.mrf.mxu0
    %v446 = vadd.f32 %v302, %v445
    %v447 = vpop.f32.mrf.mxu0
    %448 = vdwg.mxu0
    %v449 = vmax.f32 %v387, 0.0
    %v450 = vmax.f32 %v390, 0.0
    %v451 = vmax.f32 %v395, 0.0
    %v452 = vmax.f32 %v398, 0.0
    %v453 = vmax.f32 %v403, 0.0
    %v454 = vmax.f32 %v406, 0.0
    %v455 = vmax.f32 %v411, 0.0
    %v456 = vmax.f32 %v414, 0.0
    %v457 = vmax.f32 %v419, 0.0
    %v458 = vmax.f32 %v422, 0.0
    %v459 = vmax.f32 %v427, 0.0
    %v460 = vmax.f32 %v430, 0.0
    %v461 = vmax.f32 %v435, 0.0
    %v462 = vmax.f32 %v438, 0.0
    %v463 = vmax.f32 %v443, 0.0
    %v464 = vmax.f32 %v446, 0.0
    %465 = vst [vmem:[#allocation2] sm:$0xff] %v449
    %466 = vst [vmem:[#allocation2 + $0x8] sm:$0xff] %v450
    %467 = vst [vmem:[#allocation2 + $0x10] sm:$0xff] %v451
    %468 = vst [vmem:[#allocation2 + $0x18] sm:$0xff] %v452
    %469 = vst [vmem:[#allocation2 + $0x20] sm:$0xff] %v453
    %470 = vst [vmem:[#allocation2 + $0x28] sm:$0xff] %v454
    %471 = vst [vmem:[#allocation2 + $0x30] sm:$0xff] %v455
    %472 = vst [vmem:[#allocation2 + $0x38] sm:$0xff] %v456
    %473 = vst [vmem:[#allocation2 + $0x40] sm:$0xff] %v457
    %474 = vst [vmem:[#allocation2 + $0x48] sm:$0xff] %v458
    %475 = vst [vmem:[#allocation2 + $0x50] sm:$0xff] %v459
    %476 = vst [vmem:[#allocation2 + $0x58] sm:$0xff] %v460
    %477 = vst [vmem:[#allocation2 + $0x60] sm:$0xff] %v461
    %478 = vst [vmem:[#allocation2 + $0x68] sm:$0xff] %v462
    %479 = vst [vmem:[#allocation2 + $0x70] sm:$0xff] %v463
    %480 = vst [vmem:[#allocation2 + $0x78] sm:$0xff] %v464
    %v481 = vld [vmem:[#allocation2] sm:$0xff]
    %v482 = vld [vmem:[#allocation2 + $0x8] sm:$0xff]
    %v483 = vld [vmem:[#allocation2 + $0x10] sm:$0xff]
    %v484 = vld [vmem:[#allocation2 + $0x18] sm:$0xff]
    %v485 = vld [vmem:[#allocation2 + $0x20] sm:$0xff]
    %v486 = vld [vmem:[#allocation2 + $0x28] sm:$0xff]
    %v487 = vld [vmem:[#allocation2 + $0x30] sm:$0xff]
    %v488 = vld [vmem:[#allocation2 + $0x38] sm:$0xff]
    %v489 = vld [vmem:[#allocation2 + $0x40] sm:$0xff]
    %v490 = vld [vmem:[#allocation2 + $0x48] sm:$0xff]
    %v491 = vld [vmem:[#allocation2 + $0x50] sm:$0xff]
    %v492 = vld [vmem:[#allocation2 + $0x58] sm:$0xff]
    %v493 = vld [vmem:[#allocation2 + $0x60] sm:$0xff]
    %v494 = vld [vmem:[#allocation2 + $0x68] sm:$0xff]
    %v495 = vld [vmem:[#allocation2 + $0x70] sm:$0xff]
    %v496 = vld [vmem:[#allocation2 + $0x78] sm:$0xff]
    %v497 = vpack.c.bf16 %v482, %v481
    %v498 = vpack.c.bf16 %v484, %v483
    %v499 = vpack.c.bf16 %v486, %v485
    %v500 = vpack.c.bf16 %v488, %v487
    %v501 = vpack.c.bf16 %v490, %v489
    %v502 = vpack.c.bf16 %v492, %v491
    %v503 = vpack.c.bf16 %v494, %v493
    %v504 = vpack.c.bf16 %v496, %v495
    %v505 = vld [vmem:[%s5] sm:$0xf]
    %v506 = vld [vmem:[%s5 + $0x4] sm:$0xf]
    %v507 = vld [vmem:[%s5 + $0x8] sm:$0xf]
    %v508 = vld [vmem:[%s5 + $0xc] sm:$0xf]
    %v509 = vld [vmem:[%s5 + $0x10] sm:$0xf]
    %v510 = vld [vmem:[%s5 + $0x14] sm:$0xf]
    %v511 = vld [vmem:[%s5 + $0x18] sm:$0xf]
    %v512 = vld [vmem:[%s5 + $0x1c] sm:$0xf]
    %v513 = vld [vmem:[%s5 + $0x20] sm:$0xf]
    %v514 = vld [vmem:[%s5 + $0x24] sm:$0xf]
    %v515 = vld [vmem:[%s5 + $0x28] sm:$0xf]
    %v516 = vld [vmem:[%s5 + $0x2c] sm:$0xf]
    %v517 = vld [vmem:[%s5 + $0x30] sm:$0xf]
    %v518 = vld [vmem:[%s5 + $0x34] sm:$0xf]
    %v519 = vld [vmem:[%s5 + $0x38] sm:$0xf]
    %v520 = vld [vmem:[%s5 + $0x3c] sm:$0xf]
    %v521 = vld [vmem:[%s6] sm:$0x1]
    %v523 = vlaneseq
    %v524 = vshrl.u32 %v523, 7
    %v525 = vsub.s32 0, %v524
    %v526 = vrot.slane %v521, %v525
    %v544 = vunpack.c.l.b16 %v505
    %v545 = vunpack.c.l.b16 %v506
    %v546 = vunpack.c.l.b16 %v507
    %v547 = vunpack.c.l.b16 %v508
    %v548 = vunpack.c.l.b16 %v509
    %v549 = vunpack.c.l.b16 %v510
    %v550 = vunpack.c.l.b16 %v511
    %v551 = vunpack.c.l.b16 %v512
    %v552 = vunpack.c.l.b16 %v513
    %v553 = vunpack.c.l.b16 %v514
    %v554 = vunpack.c.l.b16 %v515
    %v555 = vunpack.c.l.b16 %v516
    %v556 = vunpack.c.l.b16 %v517
    %v557 = vunpack.c.l.b16 %v518
    %v558 = vunpack.c.l.b16 %v519
    %v559 = vunpack.c.l.b16 %v520
    %v560 = vpack.c.b16 %v545, %v544
    %v561 = vpack.c.b16 %v547, %v546
    %v562 = vpack.c.b16 %v549, %v548
    %v563 = vpack.c.b16 %v551, %v550
    %v564 = vpack.c.b16 %v553, %v552
    %v565 = vpack.c.b16 %v555, %v554
    %v566 = vpack.c.b16 %v557, %v556
    %v567 = vpack.c.b16 %v559, %v558
    %576 = vmatprep.subr.bf16.mxu0 0
    %577 = vmatpush1.bf16.msra.mxu0 %v567
    %578 = vmatprep.subr.bf16.mxu0 0
    %579 = vmatpush1.bf16.msra.mxu0 %v566
    %580 = vmatprep.subr.bf16.mxu0 0
    %581 = vmatpush1.bf16.msra.mxu0 %v565
    %582 = vmatprep.subr.bf16.mxu0 0
    %583 = vmatpush1.bf16.msra.mxu0 %v564
    %584 = vmatprep.subr.bf16.mxu0 0
    %585 = vmatpush1.bf16.msra.mxu0 %v563
    %586 = vmatprep.subr.bf16.mxu0 0
    %587 = vmatpush1.bf16.msra.mxu0 %v562
    %588 = vmatprep.subr.bf16.mxu0 0
    %589 = vmatpush1.bf16.msra.mxu0 %v561
    %590 = vmatprep.subr.bf16.mxu0 0
    %591 = vmatpush1.bf16.msra.mxu0 %v560
    %592 = vmatprep.subr.bf16.mxu0 0
    %593 = vmatpush2.bf16.msra.mxu0 0
    %594 = vmatprep.subr.bf16.mxu0 0
    %595 = vmatpush2.bf16.msra.mxu0 0
    %596 = vmatprep.subr.bf16.mxu0 0
    %597 = vmatpush2.bf16.msra.mxu0 0
    %598 = vmatprep.subr.bf16.mxu0 0
    %599 = vmatpush2.bf16.msra.mxu0 0
    %600 = vmatprep.subr.bf16.mxu0 0
    %601 = vmatpush2.bf16.msra.mxu0 0
    %602 = vmatprep.subr.bf16.mxu0 0
    %603 = vmatpush2.bf16.msra.mxu0 0
    %604 = vmatprep.subr.bf16.mxu0 0
    %605 = vmatpush2.bf16.msra.mxu0 0
    %606 = vmatprep.subr.bf16.mxu0 0
    %607 = vmatpush2.bf16.msra.mxu0 0
    %608 = vmatprep.mubr.bf16.mxu0 0
    %609 = vmatmul.mubr.bf16.gmra.mxu0 %v497
    %v610 = vpop.f32.mrf.mxu0
    %v611 = vadd.f32 %v526, %v610
    %v612 = vpop.f32.mrf.mxu0
    %v613 = vpop.f32.mrf.mxu0
    %v614 = vadd.f32 %v526, %v613
    %v615 = vpop.f32.mrf.mxu0
    %616 = vmatprep.mubr.bf16.mxu0 0
    %617 = vmatmul.mubr.bf16.gmra.mxu0 %v498
    %v618 = vpop.f32.mrf.mxu0
    %v619 = vadd.f32 %v526, %v618
    %v620 = vpop.f32.mrf.mxu0
    %v621 = vpop.f32.mrf.mxu0
    %v622 = vadd.f32 %v526, %v621
    %v623 = vpop.f32.mrf.mxu0
    %624 = vmatprep.mubr.bf16.mxu0 0
    %625 = vmatmul.mubr.bf16.gmra.mxu0 %v499
    %v626 = vpop.f32.mrf.mxu0
    %v627 = vadd.f32 %v526, %v626
    %v628 = vpop.f32.mrf.mxu0
    %v629 = vpop.f32.mrf.mxu0
    %v630 = vadd.f32 %v526, %v629
    %v631 = vpop.f32.mrf.mxu0
    %632 = vmatprep.mubr.bf16.mxu0 0
    %633 = vmatmul.mubr.bf16.gmra.mxu0 %v500
    %v634 = vpop.f32.mrf.mxu0
    %v635 = vadd.f32 %v526, %v634
    %v636 = vpop.f32.mrf.mxu0
    %v637 = vpop.f32.mrf.mxu0
    %v638 = vadd.f32 %v526, %v637
    %v639 = vpop.f32.mrf.mxu0
    %640 = vmatprep.mubr.bf16.mxu0 0
    %641 = vmatmul.mubr.bf16.gmra.mxu0 %v501
    %v642 = vpop.f32.mrf.mxu0
    %v643 = vadd.f32 %v526, %v642
    %v644 = vpop.f32.mrf.mxu0
    %v645 = vpop.f32.mrf.mxu0
    %v646 = vadd.f32 %v526, %v645
    %v647 = vpop.f32.mrf.mxu0
    %648 = vmatprep.mubr.bf16.mxu0 0
    %649 = vmatmul.mubr.bf16.gmra.mxu0 %v502
    %v650 = vpop.f32.mrf.mxu0
    %v651 = vadd.f32 %v526, %v650
    %v652 = vpop.f32.mrf.mxu0
    %v653 = vpop.f32.mrf.mxu0
    %v654 = vadd.f32 %v526, %v653
    %v655 = vpop.f32.mrf.mxu0
    %656 = vmatprep.mubr.bf16.mxu0 0
    %657 = vmatmul.mubr.bf16.gmra.mxu0 %v503
    %v658 = vpop.f32.mrf.mxu0
    %v659 = vadd.f32 %v526, %v658
    %v660 = vpop.f32.mrf.mxu0
    %v661 = vpop.f32.mrf.mxu0
    %v662 = vadd.f32 %v526, %v661
    %v663 = vpop.f32.mrf.mxu0
    %664 = vmatprep.mubr.bf16.mxu0 0
    %665 = vmatmul.mubr.bf16.gmra.mxu0 %v504
    %v666 = vpop.f32.mrf.mxu0
    %v667 = vadd.f32 %v526, %v666
    %v668 = vpop.f32.mrf.mxu0
    %v669 = vpop.f32.mrf.mxu0
    %v670 = vadd.f32 %v526, %v669
    %v671 = vpop.f32.mrf.mxu0
    %672 = vdwg.mxu0
    %673 = vst [vmem:[%s7] sm:$0xff] %v611
    %674 = vst [vmem:[%s7 + $0x8] sm:$0xff] %v614
    %675 = vst [vmem:[%s7 + $0x10] sm:$0xff] %v619
    %676 = vst [vmem:[%s7 + $0x18] sm:$0xff] %v622
    %677 = vst [vmem:[%s7 + $0x20] sm:$0xff] %v627
    %678 = vst [vmem:[%s7 + $0x28] sm:$0xff] %v630
    %679 = vst [vmem:[%s7 + $0x30] sm:$0xff] %v635
    %680 = vst [vmem:[%s7 + $0x38] sm:$0xff] %v638
    %681 = vst [vmem:[%s7 + $0x40] sm:$0xff] %v643
    %682 = vst [vmem:[%s7 + $0x48] sm:$0xff] %v646
    %683 = vst [vmem:[%s7 + $0x50] sm:$0xff] %v651
    %684 = vst [vmem:[%s7 + $0x58] sm:$0xff] %v654
    %685 = vst [vmem:[%s7 + $0x60] sm:$0xff] %v659
    %686 = vst [vmem:[%s7 + $0x68] sm:$0xff] %v662
    %687 = vst [vmem:[%s7 + $0x70] sm:$0xff] %v667
    %688 = vst [vmem:[%s7 + $0x78] sm:$0xff] %v670
    // Predicated region
    $region34: #{_lambda_.1} parent=1 // pred_check
      _
    $region35: #{_lambda_.1} parent=1 // pred_check_branch
      %690 = sbr.rel (0) target = $region37
    $region36: #{_lambda_.1} parent=1 // pred_region
      _
    $region37: #{_lambda_.1} parent=1 // pred_fallthru
      _
    // Predicated region
    $region38: #{_lambda_.1} parent=1 // pred_check
      _
    $region39: #{_lambda_.1} parent=1 // pred_check_branch
      %692 = sbr.rel (0) target = $region41
    $region40: #{_lambda_.1} parent=1 // pred_region
      _
    $region41: #{_lambda_.1} parent=1 // pred_fallthru
      _
    %693 = vsyncpa [#allocation4], 1

</llo_original>
